<compile_context>
chip_gen: v7x
topology: tpu7x:2x2x1
jax: 0.10.0
libtpu: 0.0.40
codegen_flags: <defaults>
</compile_context>

<pallas_src>
import math

import jax
import jax.numpy as jnp
from jax.experimental import pallas as pl
from jax.experimental.pallas import tpu as pltpu


_SIGN_BIT = {
    jnp.dtype(jnp.float32): (jnp.uint32, 0x80000000),
    jnp.dtype(jnp.bfloat16): (jnp.uint16, 0x8000),
    jnp.dtype(jnp.float16): (jnp.uint16, 0x8000),
}


def _quat_conjugate_kernel(x_ref, o_ref):
    x = x_ref[...]                                   # (TM, W)
    w = x.shape[-1]
    # Single (1, W) lane-index row; quaternion component = lane & 3 since W%4==0.
    lane = jax.lax.broadcasted_iota(jnp.int32, (1, w), 1)
    is_real = (lane & 3) == 0                        # True on the scalar part

    key = jnp.dtype(x.dtype)
    if key in _SIGN_BIT:
        # Sign-bit XOR: exact negation of imaginary lanes, one int VALU op.
        udtype, bit = _SIGN_BIT[key]
        flip = jnp.where(is_real, udtype(0), udtype(bit))   # (1, W) row
        xi = pltpu.bitcast(x, udtype)
        o_ref[...] = pltpu.bitcast(xi ^ flip, x.dtype)
    else:
        one = jnp.ones((), dtype=x.dtype)
        sign = jnp.where(is_real, one, -one)         # (1, W) broadcast row
        o_ref[...] = x * sign


def _round_up(n, k):
    return ((n + k - 1) // k) * k


def _sublane_pack(itemsize):
    # f32 -> 8, bf16/f16 -> 16, int8/fp8 -> 32 (native sublane packing).
    return max(8, 32 // max(1, itemsize))


def _pick_lane_width(total):
    """Lane width W for the flattened [M, W] view.

    Prefers the largest multiple of 128 (<= 2048) dividing `total` that still
    leaves at least 8 rows (full unmasked stores); otherwise the largest
    multiple-of-128 divisor at all.  Only falls back to a sub-128 (multiple of
    4) width for totals not divisible by 128."""
    best_128 = None
    for w in range(2048, 127, -128):
        if total % w == 0:
            if best_128 is None:
                best_128 = w
            if total // w >= 8:
                return w
    if best_128 is not None:
        return best_128
    # TODO(synk): for totals not divisible by 128, a 128-aligned-bulk + tiny
    # tail split would keep unmasked stores; rare in practice, so keep the
    # simple masked-store fallback here.
    for w in range(508, 3, -4):
        if total % w == 0:
            return w
    return 4


def _pick_tile_rows(m, w, itemsize):
    """Tile rows: multiple of the sublane packing, block ~4 MiB (v7x-safe)."""
    pack = _sublane_pack(itemsize)
    target_bytes = 4 << 20
    tm = max(pack, (target_bytes // max(1, w * itemsize)) // pack * pack)
    tm = min(tm, _round_up(m, pack))
    # Prefer >= 2 grid steps so both v7x TensorCores get work when possible.
    if -(-m // tm) < 2 and m > pack:
        tm = max(pack, _round_up(-(-m // 2), pack))
    return tm


def quat_conjugate(x):
    """Pallas TPU implementation of quatConjugateModule.forward.

    x: jnp.ndarray of shape [B, D1, D2, 4] (quaternion components last).
    """
    assert x.ndim == 4 and x.shape[3] == 4, "expected [B, D1, D2, 4] quaternions"
    orig_shape = x.shape
    total = math.prod(orig_shape)
    itemsize = jnp.dtype(x.dtype).itemsize

    # Lane-dense 2D view: rows of whole quaternions, width W (multiple of 4).
    w = _pick_lane_width(total)
    m = total // w
    x2 = x.reshape(m, w)

    tm = _pick_tile_rows(m, w, itemsize)
    grid = (pl.cdiv(m, tm),)

    cost = pl.CostEstimate(
        flops=total,
        transcendentals=0,
        bytes_accessed=2 * total * itemsize,
    )

    out2 = pl.pallas_call(
        _quat_conjugate_kernel,
        out_shape=jax.ShapeDtypeStruct((m, w), x.dtype),
        grid=grid,
        in_specs=[pl.BlockSpec((tm, w), lambda i: (i, 0))],
        out_specs=pl.BlockSpec((tm, w), lambda i: (i, 0)),
        compiler_params=pltpu.CompilerParams(
            dimension_semantics=("parallel",),
            vmem_limit_bytes=32 << 20,
        ),
        cost_estimate=cost,
    )(x2)

    return out2.reshape(orig_shape)


def _reference(x):
    # Pure-JAX reference mirroring the torch code exactly.
    x_split1 = x[:, :, :, 0:1]
    x_split2 = x[:, :, :, 1:4] * (-1)
    return jnp.concatenate((x_split1, x_split2), axis=3)


if __name__ == "__main__":
    key = jax.random.PRNGKey(0)
    # Small shape consistent with the module: batch=2, 8x16 "spatial", quat dim=4.
    x = jax.random.normal(key, (2, 8, 16, 4), dtype=jnp.float32)

    out = quat_conjugate(x)
    out = jax.block_until_ready(out)

    ref = _reference(x)
    assert out.shape == ref.shape and out.dtype == ref.dtype
    assert jnp.allclose(out, ref), "mismatch vs reference"

    print("KERNEL_OK")
</pallas_src>

<mosaic_0001>
module attributes {stable_mosaic.version = 11 : i64} {
  func.func @_quat_conjugate_kernel(%arg0: i32, %arg1: memref<8x128xf32, #tpu.memory_space<vmem>>, %arg2: memref<8x128xf32, #tpu.memory_space<vmem>>) attributes {dimension_semantics = [#tpu.dimension_semantics<parallel>], iteration_bounds = array<i64: 1>, scalar_prefetch = 0 : i64, scratch_operands = 0 : i64, tpu.core_type = #tpu.core_type<tc>, window_params = [{transform_indices = @transform_0, window_bounds = array<i64: 8, 128>}, {transform_indices = @transform_1, window_bounds = array<i64: 8, 128>}]} {
    %c0 = arith.constant 0 : index
    %c0_0 = arith.constant 0 : index
    %0 = vector.load %arg1[%c0, %c0_0] : memref<8x128xf32, #tpu.memory_space<vmem>>, vector<8x128xf32>
    %1 = tpu.iota {dimensions = array<i32: 1>} : vector<1x128xi32>
    %c3_i32 = arith.constant 3 : i32
    %2 = vector.broadcast %c3_i32 : i32 to vector<1x128xi32>
    %3 = arith.andi %1, %2 : vector<1x128xi32>
    %c0_i32 = arith.constant 0 : i32
    %4 = vector.broadcast %c0_i32 : i32 to vector<1x128xi32>
    %5 = arith.cmpi eq, %3, %4 : vector<1x128xi32>
    %c0_i32_1 = arith.constant 0 : i32
    %c-2147483648_i32 = arith.constant -2147483648 : i32
    %6 = vector.broadcast %c0_i32_1 : i32 to vector<1x128xi32>
    %7 = vector.broadcast %c-2147483648_i32 : i32 to vector<1x128xi32>
    %8 = arith.select %5, %6, %7 : vector<1x128xi1>, vector<1x128xi32>
    %9 = tpu.bitcast %0 : vector<8x128xf32> -> vector<8x128xi32>
    %10 = vector.broadcast %8 : vector<1x128xi32> to vector<8x128xi32>
    %11 = arith.xori %9, %10 : vector<8x128xi32>
    %12 = tpu.bitcast %11 : vector<8x128xi32> -> vector<8x128xf32>
    %c0_2 = arith.constant 0 : index
    %c0_3 = arith.constant 0 : index
    %13 = vector.load %arg2[%c0_2, %c0_3] : memref<8x128xf32, #tpu.memory_space<vmem>>, vector<8x128xf32>
    tpu.vector_store %arg2[%c0_2, %c0_3], %12 {strides = array<i32>} : memref<8x128xf32, #tpu.memory_space<vmem>>, vector<8x128xf32>,
    return
  }
  func.func @transform_0(%arg0: i32) -> (i32, i32) {
    %c0_i32 = arith.constant 0 : i32
    %c0_i32_0 = arith.constant 0 : i32
    return %arg0, %c0_i32 : i32, i32
  }
  func.func @transform_1(%arg0: i32) -> (i32, i32) {
    %c0_i32 = arith.constant 0 : i32
    %c0_i32_0 = arith.constant 0 : i32
    return %arg0, %c0_i32 : i32, i32
  }
}

</mosaic_0001>

<llo_original>
// kernel: tpu_custom_call.1
$region0: #{tpu_custom_call.1}
  #allocation0 [shape = 'u32[]', space=smem, size = 0x4, offset = 0x4, fixed_abs, tag = 'smem constant byte address 0x4 - core index']
  #allocation1 [shape = 'u32[144,128]{1,0:T(1,128)}', space=vmem, size = 0x12000, scoped, tag = 'internal scratch']
  %s0 = inlined_call_operand.hbm [shape: f32[8,128], index: 0, kind: input, shape index: {}]
  %s1 = inlined_call_operand.hbm [shape: f32[8,128], index: 1, kind: output, shape index: {}]
  %s2 = sld [smem:[#allocation0]]
  $region18: #{tpu_custom_call.1} parent=0
    _
  %s4 = ssub.s32 1, %s2
  %s5 = scalar_select 0, %s4, %s2
  $region1: #{tpu_custom_call.1} parent=0
    #allocation2 [shape = 'u8[4096]{0}', space=vmem, size = 0x1000, scoped, tag = 'input window, operand 0, single buffered']
    #allocation3 [shape = 's32[1]{0}', space=sflag, size = 0x4, scoped, tag = 'scoped memory for tpu_custom_call.1']
    #allocation4 [shape = 's32[1]{0}', space=sflag, size = 0x4, scoped, tag = 'scoped memory for tpu_custom_call.1']
    #allocation5 [shape = 'u8[4096]{0}', space=vmem, size = 0x1000, scoped, tag = 'output window, operand 0, single buffered']
    %6 = vsyncpa [#allocation3], 0
    %7 = vsyncpa [#allocation4], 0
    // Predicated region
    $region2: #{tpu_custom_call.1} parent=1 // pred_check
      _
    $region3: #{tpu_custom_call.1} parent=1 // pred_check_branch
      %9 = sbr.rel (0) target = $region5
    $region4: #{tpu_custom_call.1} parent=1 // pred_region
      %s11 = ssub.s32 128, 128
      %12 = vsyncadd [#allocation3], %s11
      %s14 = sshll.u32 [#allocation2], 4
      %s15 = int_to_ptr.vmem [resolvable:$true] %s14
      %17 = dma.hbm_to_vmem [thread:$0]  %s0, 128, %s15, [#allocation3]
    $region5: #{tpu_custom_call.1} parent=1 // pred_fallthru
      _
    // Predicated region
    $region6: #{tpu_custom_call.1} parent=1 // pred_check
      _
    $region7: #{tpu_custom_call.1} parent=1 // pred_check_branch
      %19 = sbr.rel (0) target = $region9
    $region8: #{tpu_custom_call.1} parent=1 // pred_region
      %20 = dma.done [#allocation3], 128
    $region9: #{tpu_custom_call.1} parent=1 // pred_fallthru
      _
    %v21 = vld [vmem:[#allocation2] sm:$0xff]
    %v22 = vlaneseq
    %v23 = vand.u32 %v22, 127
    %v24 = vand.u32 %v23, 3
    %vm25 = vcmp.eq.s32.totalorder %v24, 0
    %v26 = vsel %vm25, 0, 2147483648
    %v28 = vxor.u32 %v21, %v26
    %30 = vst [vmem:[#allocation5] sm:$0xff] %v28
    // Predicated region
    $region10: #{tpu_custom_call.1} parent=1 // pred_check
      _
    $region11: #{tpu_custom_call.1} parent=1 // pred_check_branch
      %32 = sbr.rel (0) target = $region13
    $region12: #{tpu_custom_call.1} parent=1 // pred_region
      %s34 = ssub.s32 128, 128
      %35 = vsyncadd [#allocation4], %s34
      %s37 = sshll.u32 [#allocation5], 4
      %s38 = int_to_ptr.vmem [resolvable:$true] %s37
      %40 = dma.vmem_to_hbm [thread:$0]  %s38, 128, %s1, [#allocation4]
    $region13: #{tpu_custom_call.1} parent=1 // pred_fallthru
      _
    // Predicated region
    $region14: #{tpu_custom_call.1} parent=1 // pred_check
      _
    $region15: #{tpu_custom_call.1} parent=1 // pred_check_branch
      %42 = sbr.rel (0) target = $region17
    $region16: #{tpu_custom_call.1} parent=1 // pred_region
      %43 = dma.done [#allocation4], 128
    $region17: #{tpu_custom_call.1} parent=1 // pred_fallthru
      _
    %44 = vsyncpa [#allocation3], 1
    %45 = vsyncpa [#allocation4], 1

</llo_original>
